<compile_context>
chip_gen: v6e
topology: v6e:2x2x1
jax: 0.10.0
libtpu: 0.0.40
codegen_flags: <defaults>
</compile_context>

<pallas_src>
import functools

import jax
import jax.numpy as jnp
from jax.experimental import pallas as pl
from jax.experimental.pallas import tpu as pltpu

HIDDEN = 64
LANE = 128


def _mlp_softmax_kernel(xt_ref, w1_ref, b1_ref, w2_ref, b2_ref, w3_ref, b3_ref,
                        o_ref, *, n_genomes, compute_dtype):
    # xt_ref: (n_in, TB)       observation tile, transposed (batch -> lanes)
    # w*_ref: (G, out, in)     G genomes' weights in torch (out, in) layout
    # b*_ref: (G, out, 1)      biases as column vectors (broadcast over lanes)
    # o_ref : (G, n_out, TB)   per-genome class probabilities, batch in lanes
    xt = xt_ref[...]
    xt_c = xt.astype(compute_dtype) if compute_dtype != jnp.float32 else xt

    for g in range(n_genomes):          # static unroll over genomes per step
        w1 = w1_ref[g]
        w2 = w2_ref[g]
        w3 = w3_ref[g]
        if compute_dtype != jnp.float32:
            w1 = w1.astype(compute_dtype)
            w2 = w2.astype(compute_dtype)
            w3 = w3.astype(compute_dtype)

        # y^T = W @ x^T + b  (identical math to torch's y = x @ W.T + b)
        h1 = jnp.tanh(
            jnp.dot(w1, xt_c, preferred_element_type=jnp.float32) + b1_ref[g])
        h1c = h1.astype(compute_dtype) if compute_dtype != jnp.float32 else h1
        h2 = jnp.tanh(
            jnp.dot(w2, h1c, preferred_element_type=jnp.float32) + b2_ref[g])
        h2c = h2.astype(compute_dtype) if compute_dtype != jnp.float32 else h2
        logits = (jnp.dot(w3, h2c, preferred_element_type=jnp.float32)
                  + b3_ref[g])                               # (n_out, TB)

        # Numerically stable softmax over the (small) n_out sublane axis.
        m = jnp.max(logits, axis=0, keepdims=True)
        e = jnp.exp(logits - m)
        denom = jnp.sum(e, axis=0, keepdims=True)
        o_ref[g] = (e / denom).astype(o_ref.dtype)


def population_forward(x, pop_params, *, batch_tile=1024, genomes_per_step=8,
                       compute_dtype=jnp.float32):
    """Evaluate P stacked networks on a shared observation batch.

    x:           (B, n_inputs) float32
    pop_params:  dict of stacked params (torch layout, column biases):
                   w1 (P, H, n_in),   b1 (P, H, 1),
                   w2 (P, H, H),      b2 (P, H, 1),
                   w3 (P, n_out, H),  b3 (P, n_out, 1)
    returns:     (P, B, n_outputs) float32 softmax probabilities
    """
    w1, b1 = pop_params["w1"], pop_params["b1"]
    w2, b2 = pop_params["w2"], pop_params["b2"]
    w3, b3 = pop_params["w3"], pop_params["b3"]

    P, hidden, n_in = w1.shape
    n_out = w3.shape[1]
    B = x.shape[0]

    # Batch maps to lanes -> tiles are multiples of 128 (lane-dense stores).
    bt = min(batch_tile, pl.cdiv(B, LANE) * LANE)
    bt = max(LANE, (bt // LANE) * LANE)
    nb = pl.cdiv(B, bt)
    b_pad = nb * bt

    # G genomes per grid step; pad the population with zero genomes if needed
    # (they produce a uniform softmax and are sliced off below).
    G = max(1, min(genomes_per_step, P))
    n_pop_steps = pl.cdiv(P, G)
    P_pad = n_pop_steps * G
    if P_pad != P:
        pad_p = lambda a: jnp.pad(a, ((0, P_pad - P),) + ((0, 0),) * (a.ndim - 1))
        w1, b1, w2, b2, w3, b3 = map(pad_p, (w1, b1, w2, b2, w3, b3))

    # Transpose observations once (batch -> lane axis); pad batch to the tile.
    xt = x.T
    if b_pad != B:
        xt = jnp.pad(xt, ((0, 0), (0, b_pad - B)))

    kernel = functools.partial(_mlp_softmax_kernel, n_genomes=G,
                               compute_dtype=compute_dtype)

    out = pl.pallas_call(
        kernel,
        out_shape=jax.ShapeDtypeStruct((P_pad, n_out, b_pad), jnp.float32),
        grid=(n_pop_steps, nb),
        in_specs=[
            # x varies only with the batch-tile index.
            pl.BlockSpec((n_in, bt), lambda p, b: (0, b)),
            # Weights/biases vary only with the population index -> resident
            # in VMEM across the inner batch loop.
            pl.BlockSpec((G, hidden, n_in), lambda p, b: (p, 0, 0)),
            pl.BlockSpec((G, hidden, 1), lambda p, b: (p, 0, 0)),
            pl.BlockSpec((G, hidden, hidden), lambda p, b: (p, 0, 0)),
            pl.BlockSpec((G, hidden, 1), lambda p, b: (p, 0, 0)),
            pl.BlockSpec((G, n_out, hidden), lambda p, b: (p, 0, 0)),
            pl.BlockSpec((G, n_out, 1), lambda p, b: (p, 0, 0)),
        ],
        out_specs=pl.BlockSpec((G, n_out, bt), lambda p, b: (p, 0, b)),
        compiler_params=pltpu.CompilerParams(
            # Unique output block per (p, b) -> both axes are independent;
            # on v7x this lets both TensorCores work even if one axis is 1.
            dimension_semantics=(pltpu.PARALLEL, pltpu.PARALLEL)),
    )(xt, w1, b1, w2, b2, w3, b3)

    # (P, n_out, B) -> (P, B, n_out): tiny compared with the padded lane-dense
    # slab the old kernel wrote back (32x less HBM traffic for n_out=4).
    return out[:P, :, :B].transpose(0, 2, 1)


def network_forward(x, params, **kwargs):
    """Single-network forward, identical semantics to the PyTorch module."""
    pop = {k: v[None] for k, v in params.items()}
    return population_forward(x, pop, **kwargs)[0]


def init_params(key, n_inputs, n_outputs, hidden=HIDDEN):
    """Mimics torch.nn.Linear default init; weights in torch (out, in) layout."""
    ks = jax.random.split(key, 6)

    def lin(kw, kb, fan_in, fan_out):
        bound = 1.0 / jnp.sqrt(jnp.float32(fan_in))
        w = jax.random.uniform(kw, (fan_out, fan_in), jnp.float32, -bound, bound)
        b = jax.random.uniform(kb, (fan_out, 1), jnp.float32, -bound, bound)
        return w, b

    w1, b1 = lin(ks[0], ks[1], n_inputs, hidden)
    w2, b2 = lin(ks[2], ks[3], hidden, hidden)
    w3, b3 = lin(ks[4], ks[5], hidden, n_outputs)
    return dict(w1=w1, b1=b1, w2=w2, b2=b2, w3=w3, b3=b3)


def init_population(key, pop_size, n_inputs, n_outputs, hidden=HIDDEN):
    keys = jax.random.split(key, pop_size)
    members = [init_params(k, n_inputs, n_outputs, hidden) for k in keys]
    return {name: jnp.stack([m[name] for m in members]) for name in members[0]}


# ----------------------- pure-JAX references -----------------------
def network_forward_ref(x, p):
    h1 = jnp.tanh(x @ p["w1"].T + p["b1"][:, 0])
    h2 = jnp.tanh(h1 @ p["w2"].T + p["b2"][:, 0])
    return jax.nn.softmax(h2 @ p["w3"].T + p["b3"][:, 0], axis=-1)


def population_forward_ref(x, pop):
    return jax.vmap(lambda p: network_forward_ref(x, p))(pop)


if __name__ == "__main__":
    key = jax.random.PRNGKey(0)
    k_pop, k_pop2, k_single, k_x1, k_x2, k_x3 = jax.random.split(key, 6)

    n_inputs, n_outputs = 8, 4   # small gym-style observation / action space

    # (1) Single-network forward at tiny batch — 1:1 with the PyTorch module.
    params = init_params(k_single, n_inputs, n_outputs)
    x_small = jax.random.normal(k_x1, (2, n_inputs), dtype=jnp.float32)
    out_small = jax.block_until_ready(network_forward(x_small, params))
    ref_small = network_forward_ref(x_small, params)
    assert out_small.shape == (2, n_outputs)
    assert jnp.allclose(jnp.sum(out_small, axis=-1), 1.0, atol=1e-5)
    assert jnp.allclose(out_small, ref_small, atol=1e-5, rtol=1e-5)

    # (2) Population-batched forward: P genomes x B observations in ONE
    #     gridded pallas_call (the GA fast path; here it is a single grid step).
    P, B = 8, 256
    pop = init_population(k_pop, P, n_inputs, n_outputs)
    x_big = jax.random.normal(k_x2, (B, n_inputs), dtype=jnp.float32)
    out_pop = jax.block_until_ready(population_forward(x_big, pop))
    ref_pop = population_forward_ref(x_big, pop)
    assert out_pop.shape == (P, B, n_outputs)
    assert jnp.allclose(jnp.sum(out_pop, axis=-1), 1.0, atol=1e-5)
    assert jnp.allclose(out_pop, ref_pop, atol=1e-5, rtol=1e-5)

    # (3) Non-divisible P and non-tile-aligned B: exercises population/batch
    #     padding and a multi-step grid.
    P3, B3 = 10, 300
    pop3 = init_population(k_pop2, P3, n_inputs, n_outputs)
    x3 = jax.random.normal(k_x3, (B3, n_inputs), dtype=jnp.float32)
    out3 = jax.block_until_ready(population_forward(x3, pop3))
    ref3 = population_forward_ref(x3, pop3)
    assert out3.shape == (P3, B3, n_outputs)
    assert jnp.allclose(jnp.sum(out3, axis=-1), 1.0, atol=1e-5)
    assert jnp.allclose(out3, ref3, atol=1e-5, rtol=1e-5)

    print("KERNEL_OK")
</pallas_src>

<mosaic_0001>
module attributes {stable_mosaic.version = 11 : i64} {
  func.func @_mlp_softmax_kernel(%arg0: i32, %arg1: i32, %arg2: memref<8x128xf32, #tpu.memory_space<vmem>>, %arg3: memref<1x64x8xf32, #tpu.memory_space<vmem>>, %arg4: memref<1x64x1xf32, #tpu.memory_space<vmem>>, %arg5: memref<1x64x64xf32, #tpu.memory_space<vmem>>, %arg6: memref<1x64x1xf32, #tpu.memory_space<vmem>>, %arg7: memref<1x4x64xf32, #tpu.memory_space<vmem>>, %arg8: memref<1x4x1xf32, #tpu.memory_space<vmem>>, %arg9: memref<1x4x128xf32, #tpu.memory_space<vmem>>) attributes {dimension_semantics = [#tpu.dimension_semantics<parallel>, #tpu.dimension_semantics<parallel>], iteration_bounds = array<i64: 1, 1>, scalar_prefetch = 0 : i64, scratch_operands = 0 : i64, tpu.core_type = #tpu.core_type<tc>, window_params = [{transform_indices = @transform_0, window_bounds = array<i64: 8, 128>}, {transform_indices = @transform_1, window_bounds = array<i64: 1, 64, 8>}, {transform_indices = @transform_2, window_bounds = array<i64: 1, 64, 1>}, {transform_indices = @transform_3, window_bounds = array<i64: 1, 64, 64>}, {transform_indices = @transform_4, window_bounds = array<i64: 1, 64, 1>}, {transform_indices = @transform_5, window_bounds = array<i64: 1, 4, 64>}, {transform_indices = @transform_6, window_bounds = array<i64: 1, 4, 1>}, {transform_indices = @transform_7, window_bounds = array<i64: 1, 4, 128>}]} {
    %c0 = arith.constant 0 : index
    %c0_0 = arith.constant 0 : index
    %0 = vector.load %arg2[%c0, %c0_0] : memref<8x128xf32, #tpu.memory_space<vmem>>, vector<8x128xf32>
    %c0_1 = arith.constant 0 : index
    %c0_2 = arith.constant 0 : index
    %c0_3 = arith.constant 0 : index
    %1 = vector.load %arg3[%c0_1, %c0_2, %c0_3] : memref<1x64x8xf32, #tpu.memory_space<vmem>>, vector<1x64x8xf32>
    %2 = vector.shape_cast %1 : vector<1x64x8xf32> to vector<64x8xf32>
    %c0_4 = arith.constant 0 : index
    %c0_5 = arith.constant 0 : index
    %c0_6 = arith.constant 0 : index
    %3 = vector.load %arg5[%c0_4, %c0_5, %c0_6] : memref<1x64x64xf32, #tpu.memory_space<vmem>>, vector<1x64x64xf32>
    %4 = vector.shape_cast %3 : vector<1x64x64xf32> to vector<64x64xf32>
    %c0_7 = arith.constant 0 : index
    %c0_8 = arith.constant 0 : index
    %c0_9 = arith.constant 0 : index
    %5 = vector.load %arg7[%c0_7, %c0_8, %c0_9] : memref<1x4x64xf32, #tpu.memory_space<vmem>>, vector<1x4x64xf32>
    %6 = vector.shape_cast %5 : vector<1x4x64xf32> to vector<4x64xf32>
    %cst = arith.constant dense<0.000000e+00> : vector<64x128xf32>
    %7 = tpu.matmul %2, %0, %cst {dimension_numbers = #tpu.dot_dimension_numbers<[1], [0], [0], [1], [0, 0, 1, 1], [], []>} : vector<64x8xf32>, vector<8x128xf32>, vector<64x128xf32> -> vector<64x128xf32>
    %c0_10 = arith.constant 0 : index
    %c0_11 = arith.constant 0 : index
    %c0_12 = arith.constant 0 : index
    %8 = vector.load %arg4[%c0_10, %c0_11, %c0_12] : memref<1x64x1xf32, #tpu.memory_space<vmem>>, vector<1x64x1xf32>
    %9 = vector.shape_cast %8 : vector<1x64x1xf32> to vector<64x1xf32>
    %10 = vector.broadcast %9 : vector<64x1xf32> to vector<64x128xf32>
    %11 = arith.addf %7, %10 : vector<64x128xf32>
    %12 = math.tanh %11 : vector<64x128xf32>
    %cst_13 = arith.constant dense<0.000000e+00> : vector<64x128xf32>
    %13 = tpu.matmul %4, %12, %cst_13 {dimension_numbers = #tpu.dot_dimension_numbers<[1], [0], [0], [1], [0, 0, 1, 1], [], []>} : vector<64x64xf32>, vector<64x128xf32>, vector<64x128xf32> -> vector<64x128xf32>
    %c0_14 = arith.constant 0 : index
    %c0_15 = arith.constant 0 : index
    %c0_16 = arith.constant 0 : index
    %14 = vector.load %arg6[%c0_14, %c0_15, %c0_16] : memref<1x64x1xf32, #tpu.memory_space<vmem>>, vector<1x64x1xf32>
    %15 = vector.shape_cast %14 : vector<1x64x1xf32> to vector<64x1xf32>
    %16 = vector.broadcast %15 : vector<64x1xf32> to vector<64x128xf32>
    %17 = arith.addf %13, %16 : vector<64x128xf32>
    %18 = math.tanh %17 : vector<64x128xf32>
    %cst_17 = arith.constant dense<0.000000e+00> : vector<4x128xf32>
    %19 = tpu.matmul %6, %18, %cst_17 {dimension_numbers = #tpu.dot_dimension_numbers<[1], [0], [0], [1], [0, 0, 1, 1], [], []>} : vector<4x64xf32>, vector<64x128xf32>, vector<4x128xf32> -> vector<4x128xf32>
    %c0_18 = arith.constant 0 : index
    %c0_19 = arith.constant 0 : index
    %c0_20 = arith.constant 0 : index
    %20 = vector.load %arg8[%c0_18, %c0_19, %c0_20] : memref<1x4x1xf32, #tpu.memory_space<vmem>>, vector<1x4x1xf32>
    %21 = vector.shape_cast %20 : vector<1x4x1xf32> to vector<4x1xf32>
    %22 = vector.broadcast %21 : vector<4x1xf32> to vector<4x128xf32>
    %23 = arith.addf %19, %22 : vector<4x128xf32>
    %cst_21 = arith.constant dense<0xFF800000> : vector<128xf32>
    %24 = vector.multi_reduction <maximumf>, %23, %cst_21 [0] : vector<4x128xf32> to vector<128xf32>
    %25 = vector.shape_cast %24 : vector<128xf32> to vector<1x128xf32>
    %26 = vector.broadcast %25 : vector<1x128xf32> to vector<4x128xf32>
    %27 = arith.subf %23, %26 : vector<4x128xf32>
    %28 = math.exp %27 : vector<4x128xf32>
    %cst_22 = arith.constant dense<0.000000e+00> : vector<128xf32>
    %29 = vector.multi_reduction <add>, %28, %cst_22 [0] : vector<4x128xf32> to vector<128xf32>
    %30 = vector.shape_cast %29 : vector<128xf32> to vector<1x128xf32>
    %31 = vector.broadcast %30 : vector<1x128xf32> to vector<4x128xf32>
    %32 = arith.divf %28, %31 : vector<4x128xf32>
    %c0_23 = arith.constant 0 : index
    %c0_24 = arith.constant 0 : index
    %c0_25 = arith.constant 0 : index
    %33 = vector.load %arg9[%c0_23, %c0_24, %c0_25] : memref<1x4x128xf32, #tpu.memory_space<vmem>>, vector<1x4x128xf32>
    %34 = vector.shape_cast %33 : vector<1x4x128xf32> to vector<4x128xf32>
    %35 = vector.shape_cast %32 : vector<4x128xf32> to vector<1x4x128xf32>
    tpu.vector_store %arg9[%c0_23, %c0_24, %c0_25], %35 {strides = array<i32>} : memref<1x4x128xf32, #tpu.memory_space<vmem>>, vector<1x4x128xf32>,
    return
  }
  func.func @transform_0(%arg0: i32, %arg1: i32) -> (i32, i32) {
    %c0_i32 = arith.constant 0 : i32
    %c0_i32_0 = arith.constant 0 : i32
    return %c0_i32, %arg1 : i32, i32
  }
  func.func @transform_1(%arg0: i32, %arg1: i32) -> (i32, i32, i32) {
    %c0_i32 = arith.constant 0 : i32
    %c0_i32_0 = arith.constant 0 : i32
    %c0_i32_1 = arith.constant 0 : i32
    return %arg0, %c0_i32, %c0_i32_0 : i32, i32, i32
  }
  func.func @transform_2(%arg0: i32, %arg1: i32) -> (i32, i32, i32) {
    %c0_i32 = arith.constant 0 : i32
    %c0_i32_0 = arith.constant 0 : i32
    %c0_i32_1 = arith.constant 0 : i32
    return %arg0, %c0_i32, %c0_i32_0 : i32, i32, i32
  }
  func.func @transform_3(%arg0: i32, %arg1: i32) -> (i32, i32, i32) {
    %c0_i32 = arith.constant 0 : i32
    %c0_i32_0 = arith.constant 0 : i32
    %c0_i32_1 = arith.constant 0 : i32
    return %arg0, %c0_i32, %c0_i32_0 : i32, i32, i32
  }
  func.func @transform_4(%arg0: i32, %arg1: i32) -> (i32, i32, i32) {
    %c0_i32 = arith.constant 0 : i32
    %c0_i32_0 = arith.constant 0 : i32
    %c0_i32_1 = arith.constant 0 : i32
    return %arg0, %c0_i32, %c0_i32_0 : i32, i32, i32
  }
  func.func @transform_5(%arg0: i32, %arg1: i32) -> (i32, i32, i32) {
    %c0_i32 = arith.constant 0 : i32
    %c0_i32_0 = arith.constant 0 : i32
    %c0_i32_1 = arith.constant 0 : i32
    return %arg0, %c0_i32, %c0_i32_0 : i32, i32, i32
  }
  func.func @transform_6(%arg0: i32, %arg1: i32) -> (i32, i32, i32) {
    %c0_i32 = arith.constant 0 : i32
    %c0_i32_0 = arith.constant 0 : i32
    %c0_i32_1 = arith.constant 0 : i32
    return %arg0, %c0_i32, %c0_i32_0 : i32, i32, i32
  }
  func.func @transform_7(%arg0: i32, %arg1: i32) -> (i32, i32, i32) {
    %c0_i32 = arith.constant 0 : i32
    %c0_i32_0 = arith.constant 0 : i32
    return %arg0, %c0_i32, %arg1 : i32, i32, i32
  }
}

</mosaic_0001>

<llo_original>
// kernel: tpu_custom_call.1
$region0: #{tpu_custom_call.1}
  #allocation0 [shape = 'u32[]', space=smem, size = 0x4, offset = 0x4, fixed_abs, tag = 'smem constant byte address 0x4 - core index']
  #allocation1 [shape = 'u32[144,128]{1,0:T(1,128)}', space=vmem, size = 0x12000, scoped, tag = 'internal scratch']
  %s0 = inlined_call_operand.vmem [shape: f32[8,128], index: 0, kind: input, shape index: {}]
  %s1 = inlined_call_operand.vmem [shape: f32[1,64,8], index: 1, kind: input, shape index: {}]
  %s2 = inlined_call_operand.vmem [shape: f32[1,64,1], index: 2, kind: input, shape index: {}]
  %s3 = inlined_call_operand.vmem [shape: f32[1,64,64], index: 3, kind: input, shape index: {}]
  %s4 = inlined_call_operand.vmem [shape: f32[1,64,1], index: 4, kind: input, shape index: {}]
  %s5 = inlined_call_operand.vmem [shape: f32[1,4,64], index: 5, kind: input, shape index: {}]
  %s6 = inlined_call_operand.vmem [shape: f32[1,4,1], index: 6, kind: input, shape index: {}]
  %s7 = inlined_call_operand.hbm [shape: f32[1,4,128], index: 7, kind: output, shape index: {}]
  %s8 = sld [smem:[#allocation0]]
  $region38: #{tpu_custom_call.1} parent=0
    _
  %s10 = ssub.s32 1, %s8
  %s11 = scalar_select 0, %s10, %s8
  $region1: #{tpu_custom_call.1} parent=0
    #allocation2 [shape = 'u8[2048]{0}', space=vmem, size = 0x800, scoped, tag = 'output window, operand 0, single buffered']
    #allocation3 [shape = 's32[1]{0}', space=sflag, size = 0x4, scoped, tag = 'scoped memory for tpu_custom_call.1']
    %12 = vsyncpa [#allocation3], 0
    // Predicated region
    $region2: #{tpu_custom_call.1} parent=1 // pred_check
      _
    $region3: #{tpu_custom_call.1} parent=1 // pred_check_branch
      %14 = sbr.rel (0) target = $region5
    $region4: #{tpu_custom_call.1} parent=1 // pred_region
      _
    $region5: #{tpu_custom_call.1} parent=1 // pred_fallthru
      _
    // Predicated region
    $region6: #{tpu_custom_call.1} parent=1 // pred_check
      _
    $region7: #{tpu_custom_call.1} parent=1 // pred_check_branch
      %16 = sbr.rel (0) target = $region9
    $region8: #{tpu_custom_call.1} parent=1 // pred_region
      _
    $region9: #{tpu_custom_call.1} parent=1 // pred_fallthru
      _
    // Predicated region
    $region10: #{tpu_custom_call.1} parent=1 // pred_check
      _
    $region11: #{tpu_custom_call.1} parent=1 // pred_check_branch
      %18 = sbr.rel (0) target = $region13
    $region12: #{tpu_custom_call.1} parent=1 // pred_region
      _
    $region13: #{tpu_custom_call.1} parent=1 // pred_fallthru
      _
    // Predicated region
    $region14: #{tpu_custom_call.1} parent=1 // pred_check
      _
    $region15: #{tpu_custom_call.1} parent=1 // pred_check_branch
      %20 = sbr.rel (0) target = $region17
    $region16: #{tpu_custom_call.1} parent=1 // pred_region
      _
    $region17: #{tpu_custom_call.1} parent=1 // pred_fallthru
      _
    // Predicated region
    $region18: #{tpu_custom_call.1} parent=1 // pred_check
      _
    $region19: #{tpu_custom_call.1} parent=1 // pred_check_branch
      %22 = sbr.rel (0) target = $region21
    $region20: #{tpu_custom_call.1} parent=1 // pred_region
      _
    $region21: #{tpu_custom_call.1} parent=1 // pred_fallthru
      _
    // Predicated region
    $region22: #{tpu_custom_call.1} parent=1 // pred_check
      _
    $region23: #{tpu_custom_call.1} parent=1 // pred_check_branch
      %24 = sbr.rel (0) target = $region25
    $region24: #{tpu_custom_call.1} parent=1 // pred_region
      _
    $region25: #{tpu_custom_call.1} parent=1 // pred_fallthru
      _
    // Predicated region
    $region26: #{tpu_custom_call.1} parent=1 // pred_check
      _
    $region27: #{tpu_custom_call.1} parent=1 // pred_check_branch
      %26 = sbr.rel (0) target = $region29
    $region28: #{tpu_custom_call.1} parent=1 // pred_region
      _
    $region29: #{tpu_custom_call.1} parent=1 // pred_fallthru
      _
    %v27 = vld [vmem:[%s0] sm:$0xff]
    %v28 = vld [vmem:[%s1] sm:$0xff]
    %v29 = vld [vmem:[%s1 + $0x8] sm:$0xff]
    %v30 = vld [vmem:[%s1 + $0x10] sm:$0xff]
    %v31 = vld [vmem:[%s1 + $0x18] sm:$0xff]
    %v32 = vld [vmem:[%s1 + $0x20] sm:$0xff]
    %v33 = vld [vmem:[%s1 + $0x28] sm:$0xff]
    %v34 = vld [vmem:[%s1 + $0x30] sm:$0xff]
    %v35 = vld [vmem:[%s1 + $0x38] sm:$0xff]
    %v36 = vld [vmem:[%s3] sm:$0xff]
    %v37 = vld [vmem:[%s3 + $0x8] sm:$0xff]
    %v38 = vld [vmem:[%s3 + $0x10] sm:$0xff]
    %v39 = vld [vmem:[%s3 + $0x18] sm:$0xff]
    %v40 = vld [vmem:[%s3 + $0x20] sm:$0xff]
    %v41 = vld [vmem:[%s3 + $0x28] sm:$0xff]
    %v42 = vld [vmem:[%s3 + $0x30] sm:$0xff]
    %v43 = vld [vmem:[%s3 + $0x38] sm:$0xff]
    %v44 = vld [vmem:[%s5] sm:$0xf]
    %v45 = vld [vmem:[%s2] sm:$0xff]
    %v46 = vld [vmem:[%s2 + $0x8] sm:$0xff]
    %v47 = vld [vmem:[%s2 + $0x10] sm:$0xff]
    %v48 = vld [vmem:[%s2 + $0x18] sm:$0xff]
    %v49 = vld [vmem:[%s2 + $0x20] sm:$0xff]
    %v50 = vld [vmem:[%s2 + $0x28] sm:$0xff]
    %v51 = vld [vmem:[%s2 + $0x30] sm:$0xff]
    %v52 = vld [vmem:[%s2 + $0x38] sm:$0xff]
    %54 = vset.pattern.permute.xlu0 0
    %55 = vperm.xlu0 %54, %v45
    %v56 = vpop.permute.xlu0 %55
    %59 = vset.pattern.permute.xlu0 0
    %60 = vperm.xlu0 %59, %v46
    %v61 = vpop.permute.xlu0 %60
    %64 = vset.pattern.permute.xlu0 0
    %65 = vperm.xlu0 %64, %v47
    %v66 = vpop.permute.xlu0 %65
    %69 = vset.pattern.permute.xlu0 0
    %70 = vperm.xlu0 %69, %v48
    %v71 = vpop.permute.xlu0 %70
    %74 = vset.pattern.permute.xlu0 0
    %75 = vperm.xlu0 %74, %v49
    %v76 = vpop.permute.xlu0 %75
    %79 = vset.pattern.permute.xlu0 0
    %80 = vperm.xlu0 %79, %v50
    %v81 = vpop.permute.xlu0 %80
    %84 = vset.pattern.permute.xlu0 0
    %85 = vperm.xlu0 %84, %v51
    %v86 = vpop.permute.xlu0 %85
    %89 = vset.pattern.permute.xlu0 0
    %90 = vperm.xlu0 %89, %v52
    %v91 = vpop.permute.xlu0 %90
    %vm93 = vcmask 64512
    %v95 = vsel %vm93, %v28, 0
    %v98 = vsel %vm93, %v29, 0
    %v101 = vsel %vm93, %v30, 0
    %v104 = vsel %vm93, %v31, 0
    %v107 = vsel %vm93, %v32, 0
    %v110 = vsel %vm93, %v33, 0
    %v113 = vsel %vm93, %v34, 0
    %v116 = vsel %vm93, %v35, 0
    %118 = vmatprep.subr.mxu0 0.0
    %119 = vmatpush1.msra.mxu0 0.0
    %120 = vmatprep.subr.mxu0 0.0
    %121 = vmatpush1.msra.mxu0 0.0
    %122 = vmatprep.subr.mxu0 0.0
    %123 = vmatpush1.msra.mxu0 0.0
    %124 = vmatprep.subr.mxu0 0.0
    %125 = vmatpush1.msra.mxu0 0.0
    %126 = vmatprep.subr.mxu0 0.0
    %127 = vmatpush1.msra.mxu0 0.0
    %128 = vmatprep.subr.mxu0 0.0
    %129 = vmatpush1.msra.mxu0 0.0
    %130 = vmatprep.subr.mxu0 0.0
    %131 = vmatpush1.msra.mxu0 0.0
    %132 = vmatprep.subr.mxu0 0.0
    %133 = vmatpush1.msra.mxu0 0.0
    %134 = vmatprep.subr.mxu0 0.0
    %135 = vmatpush1.msra.mxu0 0.0
    %136 = vmatprep.subr.mxu0 0.0
    %137 = vmatpush1.msra.mxu0 0.0
    %138 = vmatprep.subr.mxu0 0.0
    %139 = vmatpush1.msra.mxu0 0.0
    %140 = vmatprep.subr.mxu0 0.0
    %141 = vmatpush1.msra.mxu0 0.0
    %142 = vmatprep.subr.mxu0 0.0
    %143 = vmatpush1.msra.mxu0 0.0
    %144 = vmatprep.subr.mxu0 0.0
    %145 = vmatpush1.msra.mxu0 0.0
    %146 = vmatprep.subr.mxu0 0.0
    %147 = vmatpush1.msra.mxu0 0.0
    %148 = vmatprep.subr.mxu0 0.0
    %149 = vmatpush1.msra.mxu0 %v27
    %150 = vmatprep.subr.mxu0 0.0
    %151 = vmatpush2.msra.mxu0 0.0
    %152 = vmatprep.subr.mxu0 0.0
    %153 = vmatpush2.msra.mxu0 0.0
    %154 = vmatprep.subr.mxu0 0.0
    %155 = vmatpush2.msra.mxu0 0.0
    %156 = vmatprep.subr.mxu0 0.0
    %157 = vmatpush2.msra.mxu0 0.0
    %158 = vmatprep.subr.mxu0 0.0
    %159 = vmatpush2.msra.mxu0 0.0
    %160 = vmatprep.subr.mxu0 0.0
    %161 = vmatpush2.msra.mxu0 0.0
    %162 = vmatprep.subr.mxu0 0.0
    %163 = vmatpush2.msra.mxu0 0.0
    %164 = vmatprep.subr.mxu0 0.0
    %165 = vmatpush2.msra.mxu0 0.0
    %166 = vmatprep.subr.mxu0 0.0
    %167 = vmatpush2.msra.mxu0 0.0
    %168 = vmatprep.subr.mxu0 0.0
    %169 = vmatpush2.msra.mxu0 0.0
    %170 = vmatprep.subr.mxu0 0.0
    %171 = vmatpush2.msra.mxu0 0.0
    %172 = vmatprep.subr.mxu0 0.0
    %173 = vmatpush2.msra.mxu0 0.0
    %174 = vmatprep.subr.mxu0 0.0
    %175 = vmatpush2.msra.mxu0 0.0
    %176 = vmatprep.subr.mxu0 0.0
    %177 = vmatpush2.msra.mxu0 0.0
    %178 = vmatprep.subr.mxu0 0.0
    %179 = vmatpush2.msra.mxu0 0.0
    %180 = vmatprep.subr.mxu0 0.0
    %181 = vmatpush2.msra.mxu0 0.0
    %182 = vmatprep.mubr.f32.mxu0 0.0
    %183 = vmatmul.mubr.f32.gmra.mxu0 %v95
    %v184 = vpop.f32.mrf.mxu0
    %v185 = vadd.f32 %v56, %v184
    %v186 = vpop.f32.mrf.mxu0
    %187 = vmatprep.mubr.f32.mxu0 0.0
    %188 = vmatmul.mubr.f32.gmra.mxu0 %v98
    %v189 = vpop.f32.mrf.mxu0
    %v190 = vadd.f32 %v61, %v189
    %v191 = vpop.f32.mrf.mxu0
    %192 = vmatprep.mubr.f32.mxu0 0.0
    %193 = vmatmul.mubr.f32.gmra.mxu0 %v101
    %v194 = vpop.f32.mrf.mxu0
    %v195 = vadd.f32 %v66, %v194
    %v196 = vpop.f32.mrf.mxu0
    %197 = vmatprep.mubr.f32.mxu0 0.0
    %198 = vmatmul.mubr.f32.gmra.mxu0 %v104
    %v199 = vpop.f32.mrf.mxu0
    %v200 = vadd.f32 %v71, %v199
    %v201 = vpop.f32.mrf.mxu0
    %202 = vmatprep.mubr.f32.mxu0 0.0
    %203 = vmatmul.mubr.f32.gmra.mxu0 %v107
    %v204 = vpop.f32.mrf.mxu0
    %v205 = vadd.f32 %v76, %v204
    %v206 = vpop.f32.mrf.mxu0
    %207 = vmatprep.mubr.f32.mxu0 0.0
    %208 = vmatmul.mubr.f32.gmra.mxu0 %v110
    %v209 = vpop.f32.mrf.mxu0
    %v210 = vadd.f32 %v81, %v209
    %v211 = vpop.f32.mrf.mxu0
    %212 = vmatprep.mubr.f32.mxu0 0.0
    %213 = vmatmul.mubr.f32.gmra.mxu0 %v113
    %v214 = vpop.f32.mrf.mxu0
    %v215 = vadd.f32 %v86, %v214
    %v216 = vpop.f32.mrf.mxu0
    %217 = vmatprep.mubr.f32.mxu0 0.0
    %218 = vmatmul.mubr.f32.gmra.mxu0 %v116
    %v219 = vpop.f32.mrf.mxu0
    %v220 = vadd.f32 %v91, %v219
    %v221 = vpop.f32.mrf.mxu0
    %222 = vdwg.mxu0
    %v223 = vtanh.pop %v185
    %v224 = vtanh.pop %v190
    %v225 = vtanh.pop %v195
    %v226 = vtanh.pop %v200
    %v227 = vtanh.pop %v205
    %v228 = vtanh.pop %v210
    %v229 = vtanh.pop %v215
    %v230 = vtanh.pop %v220
    %v231 = vld [vmem:[%s4] sm:$0xff]
    %v232 = vld [vmem:[%s4 + $0x8] sm:$0xff]
    %v233 = vld [vmem:[%s4 + $0x10] sm:$0xff]
    %v234 = vld [vmem:[%s4 + $0x18] sm:$0xff]
    %v235 = vld [vmem:[%s4 + $0x20] sm:$0xff]
    %v236 = vld [vmem:[%s4 + $0x28] sm:$0xff]
    %v237 = vld [vmem:[%s4 + $0x30] sm:$0xff]
    %v238 = vld [vmem:[%s4 + $0x38] sm:$0xff]
    %240 = vset.pattern.permute.xlu0 0
    %241 = vperm.xlu0 %240, %v231
    %v242 = vpop.permute.xlu0 %241
    %245 = vset.pattern.permute.xlu0 0
    %246 = vperm.xlu0 %245, %v232
    %v247 = vpop.permute.xlu0 %246
    %250 = vset.pattern.permute.xlu0 0
    %251 = vperm.xlu0 %250, %v233
    %v252 = vpop.permute.xlu0 %251
    %255 = vset.pattern.permute.xlu0 0
    %256 = vperm.xlu0 %255, %v234
    %v257 = vpop.permute.xlu0 %256
    %260 = vset.pattern.permute.xlu0 0
    %261 = vperm.xlu0 %260, %v235
    %v262 = vpop.permute.xlu0 %261
    %265 = vset.pattern.permute.xlu0 0
    %266 = vperm.xlu0 %265, %v236
    %v267 = vpop.permute.xlu0 %266
    %270 = vset.pattern.permute.xlu0 0
    %271 = vperm.xlu0 %270, %v237
    %v272 = vpop.permute.xlu0 %271
    %275 = vset.pattern.permute.xlu0 0
    %276 = vperm.xlu0 %275, %v238
    %v277 = vpop.permute.xlu0 %276
    %vm279 = vcmask 523264
    %v281 = vsel %vm279, %v36, 0
    %v284 = vsel %vm279, %v37, 0
    %v287 = vsel %vm279, %v38, 0
    %v290 = vsel %vm279, %v39, 0
    %v293 = vsel %vm279, %v40, 0
    %v296 = vsel %vm279, %v41, 0
    %v299 = vsel %vm279, %v42, 0
    %v302 = vsel %vm279, %v43, 0
    %304 = vmatprep.subr.mxu0 0.0
    %305 = vmatpush1.msra.mxu0 0.0
    %306 = vmatprep.subr.mxu0 0.0
    %307 = vmatpush1.msra.mxu0 0.0
    %308 = vmatprep.subr.mxu0 0.0
    %309 = vmatpush1.msra.mxu0 0.0
    %310 = vmatprep.subr.mxu0 0.0
    %311 = vmatpush1.msra.mxu0 0.0
    %312 = vmatprep.subr.mxu0 0.0
    %313 = vmatpush1.msra.mxu0 0.0
    %314 = vmatprep.subr.mxu0 0.0
    %315 = vmatpush1.msra.mxu0 0.0
    %316 = vmatprep.subr.mxu0 0.0
    %317 = vmatpush1.msra.mxu0 0.0
    %318 = vmatprep.subr.mxu0 0.0
    %319 = vmatpush1.msra.mxu0 0.0
    %320 = vmatprep.subr.mxu0 0.0
    %321 = vmatpush1.msra.mxu0 %v230
    %322 = vmatprep.subr.mxu0 0.0
    %323 = vmatpush1.msra.mxu0 %v229
    %324 = vmatprep.subr.mxu0 0.0
    %325 = vmatpush1.msra.mxu0 %v228
    %326 = vmatprep.subr.mxu0 0.0
    %327 = vmatpush1.msra.mxu0 %v227
    %328 = vmatprep.subr.mxu0 0.0
    %329 = vmatpush1.msra.mxu0 %v226
    %330 = vmatprep.subr.mxu0 0.0
    %331 = vmatpush1.msra.mxu0 %v225
    %332 = vmatprep.subr.mxu0 0.0
    %333 = vmatpush1.msra.mxu0 %v224
    %334 = vmatprep.subr.mxu0 0.0
    %335 = vmatpush1.msra.mxu0 %v223
    %336 = vmatprep.subr.mxu0 0.0
    %337 = vmatpush2.msra.mxu0 0.0
    %338 = vmatprep.subr.mxu0 0.0
    %339 = vmatpush2.msra.mxu0 0.0
    %340 = vmatprep.subr.mxu0 0.0
    %341 = vmatpush2.msra.mxu0 0.0
    %342 = vmatprep.subr.mxu0 0.0
    %343 = vmatpush2.msra.mxu0 0.0
    %344 = vmatprep.subr.mxu0 0.0
    %345 = vmatpush2.msra.mxu0 0.0
    %346 = vmatprep.subr.mxu0 0.0
    %347 = vmatpush2.msra.mxu0 0.0
    %348 = vmatprep.subr.mxu0 0.0
    %349 = vmatpush2.msra.mxu0 0.0
    %350 = vmatprep.subr.mxu0 0.0
    %351 = vmatpush2.msra.mxu0 0.0
    %352 = vmatprep.subr.mxu0 0.0
    %353 = vmatpush2.msra.mxu0 0.0
    %354 = vmatprep.subr.mxu0 0.0
    %355 = vmatpush2.msra.mxu0 0.0
    %356 = vmatprep.subr.mxu0 0.0
    %357 = vmatpush2.msra.mxu0 0.0
    %358 = vmatprep.subr.mxu0 0.0
    %359 = vmatpush2.msra.mxu0 0.0
    %360 = vmatprep.subr.mxu0 0.0
    %361 = vmatpush2.msra.mxu0 0.0
    %362 = vmatprep.subr.mxu0 0.0
    %363 = vmatpush2.msra.mxu0 0.0
    %364 = vmatprep.subr.mxu0 0.0
    %365 = vmatpush2.msra.mxu0 0.0
    %366 = vmatprep.subr.mxu0 0.0
    %367 = vmatpush2.msra.mxu0 0.0
    %368 = vmatprep.mubr.f32.mxu0 0.0
    %369 = vmatmul.mubr.f32.gmra.mxu0 %v281
    %v370 = vpop.f32.mrf.mxu0
    %v371 = vadd.f32 %v242, %v370
    %v372 = vpop.f32.mrf.mxu0
    %373 = vmatprep.mubr.f32.mxu0 0.0
    %374 = vmatmul.mubr.f32.gmra.mxu0 %v284
    %v375 = vpop.f32.mrf.mxu0
    %v376 = vadd.f32 %v247, %v375
    %v377 = vpop.f32.mrf.mxu0
    %378 = vmatprep.mubr.f32.mxu0 0.0
    %379 = vmatmul.mubr.f32.gmra.mxu0 %v287
    %v380 = vpop.f32.mrf.mxu0
    %v381 = vadd.f32 %v252, %v380
    %v382 = vpop.f32.mrf.mxu0
    %383 = vmatprep.mubr.f32.mxu0 0.0
    %384 = vmatmul.mubr.f32.gmra.mxu0 %v290
    %v385 = vpop.f32.mrf.mxu0
    %v386 = vadd.f32 %v257, %v385
    %v387 = vpop.f32.mrf.mxu0
    %388 = vmatprep.mubr.f32.mxu0 0.0
    %389 = vmatmul.mubr.f32.gmra.mxu0 %v293
    %v390 = vpop.f32.mrf.mxu0
    %v391 = vadd.f32 %v262, %v390
    %v392 = vpop.f32.mrf.mxu0
    %393 = vmatprep.mubr.f32.mxu0 0.0
    %394 = vmatmul.mubr.f32.gmra.mxu0 %v296
    %v395 = vpop.f32.mrf.mxu0
    %v396 = vadd.f32 %v267, %v395
    %v397 = vpop.f32.mrf.mxu0
    %398 = vmatprep.mubr.f32.mxu0 0.0
    %399 = vmatmul.mubr.f32.gmra.mxu0 %v299
    %v400 = vpop.f32.mrf.mxu0
    %v401 = vadd.f32 %v272, %v400
    %v402 = vpop.f32.mrf.mxu0
    %403 = vmatprep.mubr.f32.mxu0 0.0
    %404 = vmatmul.mubr.f32.gmra.mxu0 %v302
    %v405 = vpop.f32.mrf.mxu0
    %v406 = vadd.f32 %v277, %v405
    %v407 = vpop.f32.mrf.mxu0
    %408 = vdwg.mxu0
    %v409 = vtanh.pop %v371
    %v410 = vtanh.pop %v376
    %v411 = vtanh.pop %v381
    %v412 = vtanh.pop %v386
    %v413 = vtanh.pop %v391
    %v414 = vtanh.pop %v396
    %v415 = vtanh.pop %v401
    %v416 = vtanh.pop %v406
    %v417 = vld [vmem:[%s6] sm:$0xf]
    %419 = vset.pattern.permute.xlu0 0
    %420 = vperm.xlu0 %419, %v417
    %v421 = vpop.permute.xlu0 %420
    %v424 = vsel %vm279, %v44, 0
    %426 = vmatprep.subr.mxu0 0.0
    %427 = vmatpush1.msra.mxu0 0.0
    %428 = vmatprep.subr.mxu0 0.0
    %429 = vmatpush1.msra.mxu0 0.0
    %430 = vmatprep.subr.mxu0 0.0
    %431 = vmatpush1.msra.mxu0 0.0
    %432 = vmatprep.subr.mxu0 0.0
    %433 = vmatpush1.msra.mxu0 0.0
    %434 = vmatprep.subr.mxu0 0.0
    %435 = vmatpush1.msra.mxu0 0.0
    %436 = vmatprep.subr.mxu0 0.0
    %437 = vmatpush1.msra.mxu0 0.0
    %438 = vmatprep.subr.mxu0 0.0
    %439 = vmatpush1.msra.mxu0 0.0
    %440 = vmatprep.subr.mxu0 0.0
    %441 = vmatpush1.msra.mxu0 0.0
    %442 = vmatprep.subr.mxu0 0.0
    %443 = vmatpush1.msra.mxu0 %v416
    %444 = vmatprep.subr.mxu0 0.0
    %445 = vmatpush1.msra.mxu0 %v415
    %446 = vmatprep.subr.mxu0 0.0
    %447 = vmatpush1.msra.mxu0 %v414
    %448 = vmatprep.subr.mxu0 0.0
    %449 = vmatpush1.msra.mxu0 %v413
    %450 = vmatprep.subr.mxu0 0.0
    %451 = vmatpush1.msra.mxu0 %v412
    %452 = vmatprep.subr.mxu0 0.0
    %453 = vmatpush1.msra.mxu0 %v411
    %454 = vmatprep.subr.mxu0 0.0
    %455 = vmatpush1.msra.mxu0 %v410
    %456 = vmatprep.subr.mxu0 0.0
    %457 = vmatpush1.msra.mxu0 %v409
    %458 = vmatprep.subr.mxu0 0.0
    %459 = vmatpush2.msra.mxu0 0.0
    %460 = vmatprep.subr.mxu0 0.0
    %461 = vmatpush2.msra.mxu0 0.0
    %462 = vmatprep.subr.mxu0 0.0
    %463 = vmatpush2.msra.mxu0 0.0
    %464 = vmatprep.subr.mxu0 0.0
    %465 = vmatpush2.msra.mxu0 0.0
    %466 = vmatprep.subr.mxu0 0.0
    %467 = vmatpush2.msra.mxu0 0.0
    %468 = vmatprep.subr.mxu0 0.0
    %469 = vmatpush2.msra.mxu0 0.0
    %470 = vmatprep.subr.mxu0 0.0
    %471 = vmatpush2.msra.mxu0 0.0
    %472 = vmatprep.subr.mxu0 0.0
    %473 = vmatpush2.msra.mxu0 0.0
    %474 = vmatprep.subr.mxu0 0.0
    %475 = vmatpush2.msra.mxu0 0.0
    %476 = vmatprep.subr.mxu0 0.0
    %477 = vmatpush2.msra.mxu0 0.0
    %478 = vmatprep.subr.mxu0 0.0
    %479 = vmatpush2.msra.mxu0 0.0
    %480 = vmatprep.subr.mxu0 0.0
    %481 = vmatpush2.msra.mxu0 0.0
    %482 = vmatprep.subr.mxu0 0.0
    %483 = vmatpush2.msra.mxu0 0.0
    %484 = vmatprep.subr.mxu0 0.0
    %485 = vmatpush2.msra.mxu0 0.0
    %486 = vmatprep.subr.mxu0 0.0
    %487 = vmatpush2.msra.mxu0 0.0
    %488 = vmatprep.subr.mxu0 0.0
    %489 = vmatpush2.msra.mxu0 0.0
    %490 = vmatprep.mubr.f32.mxu0 0.0
    %491 = vmatmul.mubr.f32.gmra.mxu0 %v424
    %v492 = vpop.f32.mrf.mxu0
    %v493 = vadd.f32 %v421, %v492
    %v494 = vpop.f32.mrf.mxu0
    %495 = vdwg.mxu0
    %vm496 = vcmask 1043456
    %v497 = vsel %vm496, %v493, -inf
    %v498 = vrot.slane %v497, 4
    %v499 = vmax.f32 %v497, %v498
    %v500 = vrot.slane %v499, 2
    %v501 = vmax.f32 %v499, %v500
    %v502 = vrot.slane %v501, 1
    %v503 = vmax.f32 %v501, %v502
    %v504 = vsub.f32 %v493, %v503
    %v505 = vmul.f32 %v504, 1.442695
    %v506 = vpow.pop %v505
    %v507 = vsel %vm496, %v506, 0.0
    %v508 = vrot.slane %v507, 4
    %v509 = vadd.f32 %v507, %v508
    %v510 = vrot.slane %v509, 2
    %v511 = vadd.f32 %v509, %v510
    %v512 = vrot.slane %v511, 1
    %v513 = vadd.f32 %v511, %v512
    %v514 = vrcp.pop %v513
    %v515 = vmul.f32 %v506, %v514
    %516 = vst [vmem:[#allocation2] sm:$0xf] %v515
    // Predicated region
    $region30: #{tpu_custom_call.1} parent=1 // pred_check
      _
    $region31: #{tpu_custom_call.1} parent=1 // pred_check_branch
      %518 = sbr.rel (0) target = $region33
    $region32: #{tpu_custom_call.1} parent=1 // pred_region
      %s520 = ssub.s32 64, 64
      %521 = vsyncadd [#allocation3], %s520
      %s523 = sshll.u32 [#allocation2], 4
      %s524 = int_to_ptr.vmem [resolvable:$true] %s523
      %526 = dma.vmem_to_hbm [thread:$0]  %s524, 64, %s7, [#allocation3]
    $region33: #{tpu_custom_call.1} parent=1 // pred_fallthru
      _
    // Predicated region
    $region34: #{tpu_custom_call.1} parent=1 // pred_check
      _
    $region35: #{tpu_custom_call.1} parent=1 // pred_check_branch
      %528 = sbr.rel (0) target = $region37
    $region36: #{tpu_custom_call.1} parent=1 // pred_region
      %529 = dma.done [#allocation3], 64
    $region37: #{tpu_custom_call.1} parent=1 // pred_fallthru
      _
    %530 = vsyncpa [#allocation3], 1

</llo_original>
